<compile_context>
chip_gen: v7x
topology: tpu7x:2x2x1
jax: 0.10.0
libtpu: 0.0.40
codegen_flags: <defaults>
</compile_context>

<pallas_src>
import jax
import jax.numpy as jnp
from jax.experimental import pallas as pl
from jax.experimental.pallas import tpu as pltpu


def _round_up(x: int, m: int) -> int:
    return (x + m - 1) // m * m


def _make_head1d_kernel(n_inputs: int, num_outputs: int):
    """Kernel refs: n_inputs x-tiles, W1, b1, W2, b2, packed output slab."""
    O = num_outputs

    def kernel(*refs):
        x_refs = refs[:n_inputs]
        w1_ref, b1_ref, w2_ref, b2_ref, out_ref = refs[n_inputs:n_inputs + 5]

        # Fused channel-concat (VMEM lane concat) -> single K=C_total MXU matmul, f32 accumulation.
        if n_inputs == 1:
            x = x_refs[0][...]
        else:
            x = jnp.concatenate([r[...] for r in x_refs], axis=1)

        h = jnp.dot(x, w1_ref[...], preferred_element_type=jnp.float32)
        h = jnp.maximum(h + b1_ref[...], 0.0)
        # (Dropout: identity at inference.)

        logits = jnp.dot(h, w2_ref[...], preferred_element_type=jnp.float32) + b2_ref[...]

        # Numerically stable row-wise softmax in f32, exact division.
        m = jnp.max(logits, axis=1, keepdims=True)
        e = jnp.exp(logits - m)
        probs = e / jnp.sum(e, axis=1, keepdims=True)

        # Lane-dense packed output: [logits | probs | zero slack] in a 128-lane-multiple block.
        out_ref[...] = jnp.zeros_like(out_ref)
        out_ref[:, 0:O] = logits.astype(out_ref.dtype)
        out_ref[:, O:2 * O] = probs.astype(out_ref.dtype)

    return kernel


def head1d_forward(batch_dict, params, conv_inputs, head_name="head_0",
                   tb_max=4096, x_dtype=jnp.bfloat16):
    """JAX wrapper replicating Head1D.forward (classification path, append_features=None)."""
    xs = [batch_dict[k] for k, _ in conv_inputs]
    chans = [c for _, c in conv_inputs]
    B = xs[0].shape[0]
    C_total = sum(chans)

    w1, b1, w2, b2 = params["w1"], params["b1"], params["w2"], params["b2"]
    H = w1.shape[1]
    O = w2.shape[1]
    OUT_W = max(128, _round_up(2 * O, 128))          # lane-dense packed output width

    # bf16 (or f32) streaming of x and W1; everything downstream stays f32.
    xs = [x if x.dtype == x_dtype else x.astype(x_dtype) for x in xs]
    w1c = w1 if w1.dtype == x_dtype else w1.astype(x_dtype)

    x_bytes = jnp.dtype(x_dtype).itemsize
    weight_bytes = C_total * H * x_bytes + (H + H * O + O) * 4

    # Generation-aware VMEM budget (v5e/v6e: 128 MiB, v7x: 64 MiB per TensorCore).
    try:
        vmem_cap = int(pltpu.get_tpu_info().vmem_capacity_bytes)
    except Exception:
        vmem_cap = 64 << 20                          # conservative fallback (v7x-sized)
    budget = min(int(vmem_cap * 0.70), 96 << 20)

    # Per-row VMEM cost: double-buffered x tiles + double-buffered packed output tile.
    per_row_bytes = 2 * (C_total * x_bytes + OUT_W * 4)
    avail = max(budget - 2 * weight_bytes - (4 << 20), 8 * per_row_bytes)
    tb_budget = max(8, (avail // per_row_bytes) // 8 * 8)
    tb_cap = max(8, (int(tb_max) // 8) * 8)
    TB = min(tb_budget, tb_cap)

    if TB >= B:
        # Whole batch fits in one tile. For large batches split in two so the v7x megacore
        # ("parallel" batch axis) keeps both TensorCores busy; tiny batches stay single-tile.
        TB = _round_up(pl.cdiv(B, 2), 8) if B >= 512 else B
    n_tiles = pl.cdiv(B, TB)

    cost = pl.CostEstimate(
        flops=2 * B * (C_total * H + H * O),
        transcendentals=B * O,                       # exp per class per row
        bytes_accessed=B * C_total * x_bytes + weight_bytes + B * OUT_W * 4,
    )

    est_vmem = TB * per_row_bytes + 2 * weight_bytes + (8 << 20)
    vmem_limit = int(min(max(est_vmem, 16 << 20), vmem_cap * 3 // 4))

    def build(single_buffer_weights: bool):
        # Weights/biases have constant index_maps (resident); single-buffer them when supported.
        wkw = {"pipeline_mode": pl.Buffered(1)} if single_buffer_weights else {}
        in_specs = (
            [pl.BlockSpec((TB, c), lambda i: (i, 0)) for c in chans]
            + [pl.BlockSpec((C_total, H), lambda i: (0, 0), **wkw),
               pl.BlockSpec((1, H), lambda i: (0, 0), **wkw),
               pl.BlockSpec((H, O), lambda i: (0, 0), **wkw),
               pl.BlockSpec((1, O), lambda i: (0, 0), **wkw)]
        )
        out_spec = pl.BlockSpec((TB, OUT_W), lambda i: (i, 0))
        return pl.pallas_call(
            _make_head1d_kernel(len(chans), O),
            out_shape=jax.ShapeDtypeStruct((B, OUT_W), jnp.float32),
            grid=(n_tiles,),
            in_specs=in_specs,
            out_specs=out_spec,
            compiler_params=pltpu.CompilerParams(
                dimension_semantics=("parallel",),   # shard batch tiles across TCs on v7x
                vmem_limit_bytes=vmem_limit,
            ),
            cost_estimate=cost,
        )

    args = (*xs, w1c, b1.reshape(1, H), w2, b2.reshape(1, O))
    try:
        out = build(True)(*args)
    except Exception:
        # Fallback if single-buffered (Buffered(1)) resident weights are rejected by this build.
        out = build(False)(*args)

    logits = out[:, :O]
    probs = out[:, O:2 * O]
    batch_dict["model.logits." + head_name] = logits
    batch_dict["model.output." + head_name] = probs
    return batch_dict


def _reference_forward(x, params, x_dtype):
    """Pure-JAX reference with the same streaming-dtype casts as the kernel."""
    xd = x.astype(x_dtype)
    w1d = params["w1"].astype(x_dtype)
    h = jnp.maximum(
        jnp.dot(xd, w1d, preferred_element_type=jnp.float32) + params["b1"], 0.0)
    logits = jnp.dot(h, params["w2"], preferred_element_type=jnp.float32) + params["b2"]
    probs = jax.nn.softmax(logits, axis=1)
    return logits, probs


def _run_case(B, conv_inputs, hidden, num_outputs, tb_max, x_dtype, tol, seed=0):
    key = jax.random.PRNGKey(seed)
    keys = jax.random.split(key, len(conv_inputs) + 4)
    C_total = sum(c for _, c in conv_inputs)

    batch_dict = {
        name: jax.random.normal(keys[idx], (B, c), jnp.float32)
        for idx, (name, c) in enumerate(conv_inputs)
    }
    params = {
        "w1": jax.random.normal(keys[-4], (C_total, hidden), jnp.float32) * 0.1,
        "b1": jax.random.normal(keys[-3], (hidden,), jnp.float32) * 0.1,
        "w2": jax.random.normal(keys[-2], (hidden, num_outputs), jnp.float32) * 0.1,
        "b2": jax.random.normal(keys[-1], (num_outputs,), jnp.float32) * 0.1,
    }

    out_dict = head1d_forward(dict(batch_dict), params, conv_inputs,
                              head_name="head_0", tb_max=tb_max, x_dtype=x_dtype)
    logits = jax.block_until_ready(out_dict["model.logits.head_0"])
    probs = jax.block_until_ready(out_dict["model.output.head_0"])

    x = jnp.concatenate([batch_dict[k] for k, _ in conv_inputs], axis=1)
    ref_logits, ref_probs = _reference_forward(x, params, x_dtype)

    assert logits.shape == (B, num_outputs) and probs.shape == (B, num_outputs)
    # Tolerance is dominated by matmul precision policy differences between XLA's reference dot
    # and the in-kernel MXU dot (not by the softmax, which uses exact f32 division).
    assert jnp.allclose(logits, ref_logits, atol=tol, rtol=tol), (
        "logits mismatch, max abs diff "
        f"{float(jnp.max(jnp.abs(logits - ref_logits)))}")
    assert jnp.allclose(probs, ref_probs, atol=tol, rtol=tol), (
        "probs mismatch, max abs diff "
        f"{float(jnp.max(jnp.abs(probs - ref_probs)))}")
    # Exact division -> rows normalize tightly.
    assert jnp.allclose(jnp.sum(probs, axis=1), 1.0, atol=1e-4)


if __name__ == "__main__":
    # Module configuration (small synthetic sizes, classification mode):
    #   conv_inputs = (('model.features_a', 16), ('model.features_b', 16))  -> C_total = 32
    #   layers_description = (32,), num_outputs = 2
    conv_inputs = (("model.features_a", 16), ("model.features_b", 16))

    # Case 1: tiny batch (B=2), bf16-streamed x/W1, single full-batch tile (TB == B, grid = 1).
    _run_case(B=2, conv_inputs=conv_inputs, hidden=32, num_outputs=2,
              tb_max=4096, x_dtype=jnp.bfloat16, tol=5e-3, seed=0)

    # Case 2: B=20 with tb_max=8 -> 3 grid steps incl. a partial (masked) last tile, resident
    # weights reused across steps, f32 streaming path.
    _run_case(B=20, conv_inputs=conv_inputs, hidden=32, num_outputs=2,
              tb_max=8, x_dtype=jnp.float32, tol=5e-3, seed=1)

    print("KERNEL_OK")
</pallas_src>

<mosaic_0001>
module attributes {stable_mosaic.version = 11 : i64} {
  func.func @kernel(%arg0: i32, %arg1: memref<2x16xbf16, #tpu.memory_space<vmem>>, %arg2: memref<2x16xbf16, #tpu.memory_space<vmem>>, %arg3: memref<32x32xbf16, #tpu.memory_space<vmem>>, %arg4: memref<1x32xf32, #tpu.memory_space<vmem>>, %arg5: memref<32x2xf32, #tpu.memory_space<vmem>>, %arg6: memref<1x2xf32, #tpu.memory_space<vmem>>, %arg7: memref<2x128xf32, #tpu.memory_space<vmem>>) attributes {dimension_semantics = [#tpu.dimension_semantics<parallel>], iteration_bounds = array<i64: 1>, scalar_prefetch = 0 : i64, scratch_operands = 0 : i64, tpu.core_type = #tpu.core_type<tc>, window_params = [{transform_indices = @transform_0, window_bounds = array<i64: 2, 16>}, {transform_indices = @transform_1, window_bounds = array<i64: 2, 16>}, {pipeline_mode = #tpu.pipeline_mode<synchronous>, transform_indices = @transform_2, window_bounds = array<i64: 32, 32>}, {pipeline_mode = #tpu.pipeline_mode<synchronous>, transform_indices = @transform_3, window_bounds = array<i64: 1, 32>}, {pipeline_mode = #tpu.pipeline_mode<synchronous>, transform_indices = @transform_4, window_bounds = array<i64: 32, 2>}, {pipeline_mode = #tpu.pipeline_mode<synchronous>, transform_indices = @transform_5, window_bounds = array<i64: 1, 2>}, {transform_indices = @transform_6, window_bounds = array<i64: 2, 128>}]} {
    %c0 = arith.constant 0 : index
    %c0_0 = arith.constant 0 : index
    %0 = vector.load %arg1[%c0, %c0_0] : memref<2x16xbf16, #tpu.memory_space<vmem>>, vector<2x16xbf16>
    %c0_1 = arith.constant 0 : index
    %c0_2 = arith.constant 0 : index
    %1 = vector.load %arg2[%c0_1, %c0_2] : memref<2x16xbf16, #tpu.memory_space<vmem>>, vector<2x16xbf16>
    %2 = tpu.concatenate %0, %1 in 1 : vector<2x16xbf16>, vector<2x16xbf16> -> vector<2x32xbf16>
    %c0_3 = arith.constant 0 : index
    %c0_4 = arith.constant 0 : index
    %3 = vector.load %arg3[%c0_3, %c0_4] : memref<32x32xbf16, #tpu.memory_space<vmem>>, vector<32x32xbf16>
    %cst = arith.constant dense<0.000000e+00> : vector<2x32xf32>
    %4 = tpu.matmul %2, %3, %cst {dimension_numbers = #tpu.dot_dimension_numbers<[1], [0], [0], [1], [0, 0, 1, 1], [], []>} : vector<2x32xbf16>, vector<32x32xbf16>, vector<2x32xf32> -> vector<2x32xf32>
    %c0_5 = arith.constant 0 : index
    %c0_6 = arith.constant 0 : index
    %5 = vector.load %arg4[%c0_5, %c0_6] : memref<1x32xf32, #tpu.memory_space<vmem>>, vector<1x32xf32>
    %6 = vector.broadcast %5 : vector<1x32xf32> to vector<2x32xf32>
    %7 = arith.addf %4, %6 : vector<2x32xf32>
    %cst_7 = arith.constant 0.000000e+00 : f32
    %8 = vector.broadcast %cst_7 : f32 to vector<2x32xf32>
    %9 = arith.maximumf %7, %8 : vector<2x32xf32>
    %c0_8 = arith.constant 0 : index
    %c0_9 = arith.constant 0 : index
    %10 = vector.load %arg5[%c0_8, %c0_9] : memref<32x2xf32, #tpu.memory_space<vmem>>, vector<32x2xf32>
    %cst_10 = arith.constant dense<0.000000e+00> : vector<2x2xf32>
    %11 = tpu.matmul %9, %10, %cst_10 {dimension_numbers = #tpu.dot_dimension_numbers<[1], [0], [0], [1], [0, 0, 1, 1], [], []>} : vector<2x32xf32>, vector<32x2xf32>, vector<2x2xf32> -> vector<2x2xf32>
    %c0_11 = arith.constant 0 : index
    %c0_12 = arith.constant 0 : index
    %12 = vector.load %arg6[%c0_11, %c0_12] : memref<1x2xf32, #tpu.memory_space<vmem>>, vector<1x2xf32>
    %13 = vector.broadcast %12 : vector<1x2xf32> to vector<2x2xf32>
    %14 = arith.addf %11, %13 : vector<2x2xf32>
    %cst_13 = arith.constant dense<0xFF800000> : vector<2xf32>
    %15 = vector.multi_reduction <maximumf>, %14, %cst_13 [1] : vector<2x2xf32> to vector<2xf32>
    %16 = vector.shape_cast %15 : vector<2xf32> to vector<2x1xf32>
    %17 = vector.broadcast %16 : vector<2x1xf32> to vector<2x2xf32>
    %18 = arith.subf %14, %17 : vector<2x2xf32>
    %19 = math.exp %18 : vector<2x2xf32>
    %cst_14 = arith.constant dense<0.000000e+00> : vector<2xf32>
    %20 = vector.multi_reduction <add>, %19, %cst_14 [1] : vector<2x2xf32> to vector<2xf32>
    %21 = vector.shape_cast %20 : vector<2xf32> to vector<2x1xf32>
    %22 = vector.broadcast %21 : vector<2x1xf32> to vector<2x2xf32>
    %23 = arith.divf %19, %22 : vector<2x2xf32>
    %cst_15 = arith.constant 0.000000e+00 : f32
    %24 = vector.broadcast %cst_15 : f32 to vector<2x128xf32>
    %c0_16 = arith.constant 0 : index
    %c0_17 = arith.constant 0 : index
    %25 = vector.load %arg7[%c0_16, %c0_17] : memref<2x128xf32, #tpu.memory_space<vmem>>, vector<2x128xf32>
    tpu.vector_store %arg7[%c0_16, %c0_17], %24 {strides = array<i32>} : memref<2x128xf32, #tpu.memory_space<vmem>>, vector<2x128xf32>,
    %c0_18 = arith.constant 0 : index
    %c0_19 = arith.constant 0 : index
    %26 = vector.load %arg7[%c0_18, %c0_19] : memref<2x128xf32, #tpu.memory_space<vmem>>, vector<2x2xf32>
    tpu.vector_store %arg7[%c0_18, %c0_19], %14 {strides = array<i32>} : memref<2x128xf32, #tpu.memory_space<vmem>>, vector<2x2xf32>,
    %c0_20 = arith.constant 0 : index
    %c2 = arith.constant 2 : index
    %27 = vector.load %arg7[%c0_20, %c2] : memref<2x128xf32, #tpu.memory_space<vmem>>, vector<2x2xf32>
    tpu.vector_store %arg7[%c0_20, %c2], %23 {strides = array<i32>} : memref<2x128xf32, #tpu.memory_space<vmem>>, vector<2x2xf32>,
    return
  }
  func.func @transform_0(%arg0: i32) -> (i32, i32) {
    %c0_i32 = arith.constant 0 : i32
    %c0_i32_0 = arith.constant 0 : i32
    return %arg0, %c0_i32 : i32, i32
  }
  func.func @transform_1(%arg0: i32) -> (i32, i32) {
    %c0_i32 = arith.constant 0 : i32
    %c0_i32_0 = arith.constant 0 : i32
    return %arg0, %c0_i32 : i32, i32
  }
  func.func @transform_2(%arg0: i32) -> (i32, i32) {
    %c0_i32 = arith.constant 0 : i32
    %c0_i32_0 = arith.constant 0 : i32
    %c0_i32_1 = arith.constant 0 : i32
    return %c0_i32, %c0_i32_0 : i32, i32
  }
  func.func @transform_3(%arg0: i32) -> (i32, i32) {
    %c0_i32 = arith.constant 0 : i32
    %c0_i32_0 = arith.constant 0 : i32
    %c0_i32_1 = arith.constant 0 : i32
    return %c0_i32, %c0_i32_0 : i32, i32
  }
  func.func @transform_4(%arg0: i32) -> (i32, i32) {
    %c0_i32 = arith.constant 0 : i32
    %c0_i32_0 = arith.constant 0 : i32
    %c0_i32_1 = arith.constant 0 : i32
    return %c0_i32, %c0_i32_0 : i32, i32
  }
  func.func @transform_5(%arg0: i32) -> (i32, i32) {
    %c0_i32 = arith.constant 0 : i32
    %c0_i32_0 = arith.constant 0 : i32
    %c0_i32_1 = arith.constant 0 : i32
    return %c0_i32, %c0_i32_0 : i32, i32
  }
  func.func @transform_6(%arg0: i32) -> (i32, i32) {
    %c0_i32 = arith.constant 0 : i32
    %c0_i32_0 = arith.constant 0 : i32
    return %arg0, %c0_i32 : i32, i32
  }
}

module attributes {stable_mosaic.version = 11 : i64} {
  func.func @kernel(%arg0: i32, %arg1: memref<2x16xbf16, #tpu.memory_space<vmem>>, %arg2: memref<2x16xbf16, #tpu.memory_space<vmem>>, %arg3: memref<32x32xbf16, #tpu.memory_space<vmem>>, %arg4: memref<1x32xf32, #tpu.memory_space<vmem>>, %arg5: memref<32x2xf32, #tpu.memory_space<vmem>>, %arg6: memref<1x2xf32, #tpu.memory_space<vmem>>, %arg7: memref<2x128xf32, #tpu.memory_space<vmem>>) attributes {dimension_semantics = [#tpu.dimension_semantics<parallel>], iteration_bounds = array<i64: 1>, scalar_prefetch = 0 : i64, scratch_operands = 0 : i64, tpu.core_type = #tpu.core_type<tc>, window_params = [{transform_indices = @transform_0, window_bounds = array<i64: 2, 16>}, {transform_indices = @transform_1, window_bounds = array<i64: 2, 16>}, {pipeline_mode = #tpu.pipeline_mode<synchronous>, transform_indices = @transform_2, window_bounds = array<i64: 32, 32>}, {pipeline_mode = #tpu.pipeline_mode<synchronous>, transform_indices = @transform_3, window_bounds = array<i64: 1, 32>}, {pipeline_mode = #tpu.pipeline_mode<synchronous>, transform_indices = @transform_4, window_bounds = array<i64: 32, 2>}, {pipeline_mode = #tpu.pipeline_mode<synchronous>, transform_indices = @transform_5, window_bounds = array<i64: 1, 2>}, {transform_indices = @transform_6, window_bounds = array<i64: 2, 128>}]} {
    %c0 = arith.constant 0 : index
    %c0_0 = arith.constant 0 : index
    %0 = vector.load %arg1[%c0, %c0_0] : memref<2x16xbf16, #tpu.memory_space<vmem>>, vector<2x16xbf16>
    %c0_1 = arith.constant 0 : index
    %c0_2 = arith.constant 0 : index
    %1 = vector.load %arg2[%c0_1, %c0_2] : memref<2x16xbf16, #tpu.memory_space<vmem>>, vector<2x16xbf16>
    %2 = tpu.concatenate %0, %1 in 1 : vector<2x16xbf16>, vector<2x16xbf16> -> vector<2x32xbf16>
    %c0_3 = arith.constant 0 : index
    %c0_4 = arith.constant 0 : index
    %3 = vector.load %arg3[%c0_3, %c0_4] : memref<32x32xbf16, #tpu.memory_space<vmem>>, vector<32x32xbf16>
    %cst = arith.constant dense<0.000000e+00> : vector<2x32xf32>
    %4 = tpu.matmul %2, %3, %cst {dimension_numbers = #tpu.dot_dimension_numbers<[1], [0], [0], [1], [0, 0, 1, 1], [], []>} : vector<2x32xbf16>, vector<32x32xbf16>, vector<2x32xf32> -> vector<2x32xf32>
    %c0_5 = arith.constant 0 : index
    %c0_6 = arith.constant 0 : index
    %5 = vector.load %arg4[%c0_5, %c0_6] : memref<1x32xf32, #tpu.memory_space<vmem>>, vector<1x32xf32>
    %6 = vector.broadcast %5 : vector<1x32xf32> to vector<2x32xf32>
    %7 = arith.addf %4, %6 : vector<2x32xf32>
    %cst_7 = arith.constant 0.000000e+00 : f32
    %8 = vector.broadcast %cst_7 : f32 to vector<2x32xf32>
    %9 = arith.maximumf %7, %8 : vector<2x32xf32>
    %c0_8 = arith.constant 0 : index
    %c0_9 = arith.constant 0 : index
    %10 = vector.load %arg5[%c0_8, %c0_9] : memref<32x2xf32, #tpu.memory_space<vmem>>, vector<32x2xf32>
    %cst_10 = arith.constant dense<0.000000e+00> : vector<2x2xf32>
    %11 = tpu.matmul %9, %10, %cst_10 {dimension_numbers = #tpu.dot_dimension_numbers<[1], [0], [0], [1], [0, 0, 1, 1], [], []>} : vector<2x32xf32>, vector<32x2xf32>, vector<2x2xf32> -> vector<2x2xf32>
    %c0_11 = arith.constant 0 : index
    %c0_12 = arith.constant 0 : index
    %12 = vector.load %arg6[%c0_11, %c0_12] : memref<1x2xf32, #tpu.memory_space<vmem>>, vector<1x2xf32>
    %13 = vector.broadcast %12 : vector<1x2xf32> to vector<2x2xf32>
    %14 = arith.addf %11, %13 : vector<2x2xf32>
    %cst_13 = arith.constant dense<0xFF800000> : vector<2xf32>
    %15 = vector.multi_reduction <maximumf>, %14, %cst_13 [1] : vector<2x2xf32> to vector<2xf32>
    %16 = vector.shape_cast %15 : vector<2xf32> to vector<2x1xf32>
    %17 = vector.broadcast %16 : vector<2x1xf32> to vector<2x2xf32>
    %18 = arith.subf %14, %17 : vector<2x2xf32>
    %19 = math.exp %18 : vector<2x2xf32>
    %cst_14 = arith.constant dense<0.000000e+00> : vector<2xf32>
    %20 = vector.multi_reduction <add>, %19, %cst_14 [1] : vector<2x2xf32> to vector<2xf32>
    %21 = vector.shape_cast %20 : vector<2xf32> to vector<2x1xf32>
    %22 = vector.broadcast %21 : vector<2x1xf32> to vector<2x2xf32>
    %23 = arith.divf %19, %22 : vector<2x2xf32>
    %cst_15 = arith.constant 0.000000e+00 : f32
    %24 = vector.broadcast %cst_15 : f32 to vector<2x128xf32>
    %c0_16 = arith.constant 0 : index
    %c0_17 = arith.constant 0 : index
    %25 = vector.load %arg7[%c0_16, %c0_17] : memref<2x128xf32, #tpu.memory_space<vmem>>, vector<2x128xf32>
    tpu.vector_store %arg7[%c0_16, %c0_17], %24 {strides = array<i32>} : memref<2x128xf32, #tpu.memory_space<vmem>>, vector<2x128xf32>,
    %c0_18 = arith.constant 0 : index
    %c0_19 = arith.constant 0 : index
    %26 = vector.load %arg7[%c0_18, %c0_19] : memref<2x128xf32, #tpu.memory_space<vmem>>, vector<2x2xf32>
    tpu.vector_store %arg7[%c0_18, %c0_19], %14 {strides = array<i32>} : memref<2x128xf32, #tpu.memory_space<vmem>>, vector<2x2xf32>,
    %c0_20 = arith.constant 0 : index
    %c2 = arith.constant 2 : index
    %27 = vector.load %arg7[%c0_20, %c2] : memref<2x128xf32, #tpu.memory_space<vmem>>, vector<2x2xf32>
    tpu.vector_store %arg7[%c0_20, %c2], %23 {strides = array<i32>} : memref<2x128xf32, #tpu.memory_space<vmem>>, vector<2x2xf32>,
    return
  }
  func.func @transform_0(%arg0: i32) -> (i32, i32) {
    %c0_i32 = arith.constant 0 : i32
    %c0_i32_0 = arith.constant 0 : i32
    return %arg0, %c0_i32 : i32, i32
  }
  func.func @transform_1(%arg0: i32) -> (i32, i32) {
    %c0_i32 = arith.constant 0 : i32
    %c0_i32_0 = arith.constant 0 : i32
    return %arg0, %c0_i32 : i32, i32
  }
  func.func @transform_2(%arg0: i32) -> (i32, i32) {
    %c0_i32 = arith.constant 0 : i32
    %c0_i32_0 = arith.constant 0 : i32
    %c0_i32_1 = arith.constant 0 : i32
    return %c0_i32, %c0_i32_0 : i32, i32
  }
  func.func @transform_3(%arg0: i32) -> (i32, i32) {
    %c0_i32 = arith.constant 0 : i32
    %c0_i32_0 = arith.constant 0 : i32
    %c0_i32_1 = arith.constant 0 : i32
    return %c0_i32, %c0_i32_0 : i32, i32
  }
  func.func @transform_4(%arg0: i32) -> (i32, i32) {
    %c0_i32 = arith.constant 0 : i32
    %c0_i32_0 = arith.constant 0 : i32
    %c0_i32_1 = arith.constant 0 : i32
    return %c0_i32, %c0_i32_0 : i32, i32
  }
  func.func @transform_5(%arg0: i32) -> (i32, i32) {
    %c0_i32 = arith.constant 0 : i32
    %c0_i32_0 = arith.constant 0 : i32
    %c0_i32_1 = arith.constant 0 : i32
    return %c0_i32, %c0_i32_0 : i32, i32
  }
  func.func @transform_6(%arg0: i32) -> (i32, i32) {
    %c0_i32 = arith.constant 0 : i32
    %c0_i32_0 = arith.constant 0 : i32
    return %arg0, %c0_i32 : i32, i32
  }
}

</mosaic_0001>

<llo_original>
// kernel: tpu_custom_call.1
$region0: #{tpu_custom_call.1}
  #allocation0 [shape = 'u32[]', space=smem, size = 0x4, offset = 0x4, fixed_abs, tag = 'smem constant byte address 0x4 - core index']
  #allocation1 [shape = 'u32[144,128]{1,0:T(1,128)}', space=vmem, size = 0x12000, scoped, tag = 'internal scratch']
  %s0 = inlined_call_operand.vmem [shape: bf16[2,16], index: 0, kind: input, shape index: {}]
  %s1 = inlined_call_operand.vmem [shape: bf16[2,16], index: 1, kind: input, shape index: {}]
  %s2 = inlined_call_operand.vmem [shape: bf16[32,32], index: 2, kind: input, shape index: {}]
  %s3 = inlined_call_operand.vmem [shape: f32[1,32], index: 3, kind: input, shape index: {}]
  %s4 = inlined_call_operand.vmem [shape: f32[32,2], index: 4, kind: input, shape index: {}]
  %s5 = inlined_call_operand.vmem [shape: f32[1,2], index: 5, kind: input, shape index: {}]
  %s6 = inlined_call_operand.hbm [shape: f32[2,128], index: 6, kind: output, shape index: {}]
  %s7 = sld [smem:[#allocation0]]
  $region34: #{tpu_custom_call.1} parent=0
    _
  %s9 = ssub.s32 1, %s7
  %s10 = scalar_select 0, %s9, %s7
  $region1: #{tpu_custom_call.1} parent=0
    #allocation2 [shape = 'u8[1024]{0}', space=vmem, size = 0x400, scoped, tag = 'output window, operand 0, single buffered']
    #allocation3 [shape = 's32[1]{0}', space=sflag, size = 0x4, scoped, tag = 'scoped memory for tpu_custom_call.1']
    %11 = vsyncpa [#allocation3], 0
    // Predicated region
    $region2: #{tpu_custom_call.1} parent=1 // pred_check
      _
    $region3: #{tpu_custom_call.1} parent=1 // pred_check_branch
      %13 = sbr.rel (0) target = $region5
    $region4: #{tpu_custom_call.1} parent=1 // pred_region
      _
    $region5: #{tpu_custom_call.1} parent=1 // pred_fallthru
      _
    // Predicated region
    $region6: #{tpu_custom_call.1} parent=1 // pred_check
      _
    $region7: #{tpu_custom_call.1} parent=1 // pred_check_branch
      %15 = sbr.rel (0) target = $region9
    $region8: #{tpu_custom_call.1} parent=1 // pred_region
      _
    $region9: #{tpu_custom_call.1} parent=1 // pred_fallthru
      _
    // Predicated region
    $region10: #{tpu_custom_call.1} parent=1 // pred_check
      _
    $region11: #{tpu_custom_call.1} parent=1 // pred_check_branch
      %17 = sbr.rel (0) target = $region13
    $region12: #{tpu_custom_call.1} parent=1 // pred_region
      _
    $region13: #{tpu_custom_call.1} parent=1 // pred_fallthru
      _
    // Predicated region
    $region14: #{tpu_custom_call.1} parent=1 // pred_check
      _
    $region15: #{tpu_custom_call.1} parent=1 // pred_check_branch
      %19 = sbr.rel (0) target = $region17
    $region16: #{tpu_custom_call.1} parent=1 // pred_region
      _
    $region17: #{tpu_custom_call.1} parent=1 // pred_fallthru
      _
    // Predicated region
    $region18: #{tpu_custom_call.1} parent=1 // pred_check
      _
    $region19: #{tpu_custom_call.1} parent=1 // pred_check_branch
      %21 = sbr.rel (0) target = $region21
    $region20: #{tpu_custom_call.1} parent=1 // pred_region
      _
    $region21: #{tpu_custom_call.1} parent=1 // pred_fallthru
      _
    // Predicated region
    $region22: #{tpu_custom_call.1} parent=1 // pred_check
      _
    $region23: #{tpu_custom_call.1} parent=1 // pred_check_branch
      %23 = sbr.rel (0) target = $region25
    $region24: #{tpu_custom_call.1} parent=1 // pred_region
      _
    $region25: #{tpu_custom_call.1} parent=1 // pred_fallthru
      _
    %v25 = vld [vmem:[%s0] sm:$0x1]
    %v26 = vld [vmem:[%s1] sm:$0x1]
    %v29 = vunpack.c.l.s4 1966171168
    %v30 = vunpack.c.0.s8 %v29
    %v31 = vlaneseq
    %v32 = vshrl.u32 %v31, 7
    %v33 = vsub.s32 %v30, %v32
    %v34 = vrot.slane %v26, %v33
    %v36 = vunpack.c.l.s4 1966171168
    %v37 = vunpack.c.0.s8 %v36
    %v38 = vlaneseq
    %v39 = vshrl.u32 %v38, 7
    %v40 = vsub.s32 %v37, %v39
    %v41 = vrot.slane %v34, %v40
    %42 = vrot.lane.b32.xlu0 %v41, 16
    %v43 = vpop.permute.xlu0 %42
    %vm44 = vcmask 130048
    %v47 = vsel %vm44, %v25, %v43
    %v48 = vld [vmem:[%s2] sm:$0xf]
    %v49 = vld [vmem:[%s2 + $0x4] sm:$0xf]
    %v50 = vld [vmem:[%s2 + $0x8] sm:$0xf]
    %v51 = vld [vmem:[%s2 + $0xc] sm:$0xf]
    %v52 = vld [vmem:[%s3] sm:$0x1]
    %v54 = vlaneseq
    %v55 = vshrl.u32 %v54, 7
    %v56 = vsub.s32 0, %v55
    %v57 = vrot.slane %v52, %v56
    %v63 = vunpack.c.l.b16 %v48
    %v64 = vunpack.c.l.b16 %v49
    %v65 = vunpack.c.l.b16 %v50
    %v66 = vunpack.c.l.b16 %v51
    %v67 = vpack.c.b16 %v64, %v63
    %v68 = vpack.c.b16 %v66, %v65
    %vm71 = vcmask 261120
    %v72 = vsel %vm71, %v47, 0
    %74 = vmatprep.subr.bf16.mxu0 0
    %75 = vmatpush1.bf16.msra.mxu0 %v67
    %76 = vmatprep.subr.bf16.mxu0 0
    %77 = vmatpush1.bf16.msra.mxu0 %v68
    %78 = vmatprep.subr.bf16.mxu0 0
    %79 = vmatpush1.bf16.msra.mxu0 0
    %80 = vmatprep.subr.bf16.mxu0 0
    %81 = vmatpush1.bf16.msra.mxu0 0
    %82 = vmatprep.subr.bf16.mxu0 0
    %83 = vmatpush1.bf16.msra.mxu0 0
    %84 = vmatprep.subr.bf16.mxu0 0
    %85 = vmatpush1.bf16.msra.mxu0 0
    %86 = vmatprep.subr.bf16.mxu0 0
    %87 = vmatpush1.bf16.msra.mxu0 0
    %88 = vmatprep.subr.bf16.mxu0 0
    %89 = vmatpush1.bf16.msra.mxu0 0
    %90 = vmatprep.subr.bf16.mxu0 0
    %91 = vmatpush1.bf16.msra.mxu0 0
    %92 = vmatprep.subr.bf16.mxu0 0
    %93 = vmatpush1.bf16.msra.mxu0 0
    %94 = vmatprep.subr.bf16.mxu0 0
    %95 = vmatpush1.bf16.msra.mxu0 0
    %96 = vmatprep.subr.bf16.mxu0 0
    %97 = vmatpush1.bf16.msra.mxu0 0
    %98 = vmatprep.subr.bf16.mxu0 0
    %99 = vmatpush1.bf16.msra.mxu0 0
    %100 = vmatprep.subr.bf16.mxu0 0
    %101 = vmatpush1.bf16.msra.mxu0 0
    %102 = vmatprep.subr.bf16.mxu0 0
    %103 = vmatpush1.bf16.msra.mxu0 0
    %104 = vmatprep.subr.bf16.mxu0 0
    %105 = vmatpush1.bf16.msra.mxu0 0
    %106 = vmatprep.mubr.bf16.mxu0 0
    %107 = vmatmul.mubr.bf16.gmra.mrb[0].mxu0 %v72
    %v108 = vpop.f32.mrb[0].mxu0
    %v109 = vadd.f32 %v57, %v108
    %v110 = vpop.f32.mrb[0].mxu0
    %v111 = vpop.f32.mrb[0].mxu0
    %v112 = vpop.f32.mrb[0].mxu0
    %113 = vdwg.mxu0
    %v114 = vmax.f32 %v109, 0.0
    %v115 = vld [vmem:[%s4] sm:$0xff]
    %v116 = vld [vmem:[%s4 + $0x8] sm:$0xff]
    %v117 = vld [vmem:[%s4 + $0x10] sm:$0xff]
    %v118 = vld [vmem:[%s4 + $0x18] sm:$0xff]
    %v119 = vld [vmem:[%s5] sm:$0x1]
    %v121 = vlaneseq
    %v122 = vshrl.u32 %v121, 7
    %v123 = vsub.s32 0, %v122
    %v124 = vrot.slane %v119, %v123
    %v127 = vsel %vm71, %v114, 0
    %129 = vmatprep.subr.mxu0 0.0
    %130 = vmatpush1.msra.mxu0 %v115
    %131 = vmatprep.subr.mxu0 0.0
    %132 = vmatpush1.msra.mxu0 %v116
    %133 = vmatprep.subr.mxu0 0.0
    %134 = vmatpush1.msra.mxu0 %v117
    %135 = vmatprep.subr.mxu0 0.0
    %136 = vmatpush1.msra.mxu0 %v118
    %137 = vmatprep.subr.mxu0 0.0
    %138 = vmatpush1.msra.mxu0 0.0
    %139 = vmatprep.subr.mxu0 0.0
    %140 = vmatpush1.msra.mxu0 0.0
    %141 = vmatprep.subr.mxu0 0.0
    %142 = vmatpush1.msra.mxu0 0.0
    %143 = vmatprep.subr.mxu0 0.0
    %144 = vmatpush1.msra.mxu0 0.0
    %145 = vmatprep.subr.mxu0 0.0
    %146 = vmatpush1.msra.mxu0 0.0
    %147 = vmatprep.subr.mxu0 0.0
    %148 = vmatpush1.msra.mxu0 0.0
    %149 = vmatprep.subr.mxu0 0.0
    %150 = vmatpush1.msra.mxu0 0.0
    %151 = vmatprep.subr.mxu0 0.0
    %152 = vmatpush1.msra.mxu0 0.0
    %153 = vmatprep.subr.mxu0 0.0
    %154 = vmatpush1.msra.mxu0 0.0
    %155 = vmatprep.subr.mxu0 0.0
    %156 = vmatpush1.msra.mxu0 0.0
    %157 = vmatprep.subr.mxu0 0.0
    %158 = vmatpush1.msra.mxu0 0.0
    %159 = vmatprep.subr.mxu0 0.0
    %160 = vmatpush1.msra.mxu0 0.0
    %161 = vmatprep.subr.mxu0 0.0
    %162 = vmatpush1.msra.mxu0 0.0
    %163 = vmatprep.subr.mxu0 0.0
    %164 = vmatpush1.msra.mxu0 0.0
    %165 = vmatprep.subr.mxu0 0.0
    %166 = vmatpush1.msra.mxu0 0.0
    %167 = vmatprep.subr.mxu0 0.0
    %168 = vmatpush1.msra.mxu0 0.0
    %169 = vmatprep.subr.mxu0 0.0
    %170 = vmatpush1.msra.mxu0 0.0
    %171 = vmatprep.subr.mxu0 0.0
    %172 = vmatpush1.msra.mxu0 0.0
    %173 = vmatprep.subr.mxu0 0.0
    %174 = vmatpush1.msra.mxu0 0.0
    %175 = vmatprep.subr.mxu0 0.0
    %176 = vmatpush1.msra.mxu0 0.0
    %177 = vmatprep.subr.mxu0 0.0
    %178 = vmatpush1.msra.mxu0 0.0
    %179 = vmatprep.subr.mxu0 0.0
    %180 = vmatpush1.msra.mxu0 0.0
    %181 = vmatprep.subr.mxu0 0.0
    %182 = vmatpush1.msra.mxu0 0.0
    %183 = vmatprep.subr.mxu0 0.0
    %184 = vmatpush1.msra.mxu0 0.0
    %185 = vmatprep.subr.mxu0 0.0
    %186 = vmatpush1.msra.mxu0 0.0
    %187 = vmatprep.subr.mxu0 0.0
    %188 = vmatpush1.msra.mxu0 0.0
    %189 = vmatprep.subr.mxu0 0.0
    %190 = vmatpush1.msra.mxu0 0.0
    %191 = vmatprep.subr.mxu0 0.0
    %192 = vmatpush1.msra.mxu0 0.0
    %193 = vmatprep.mubr.f32.mxu0 0.0
    %194 = vmatmul.mubr.f32.gmra.mrb[0].mxu0 %v127
    %v195 = vpop.f32.mrb[0].mxu0
    %v196 = vadd.f32 %v124, %v195
    %v197 = vpop.f32.mrb[0].mxu0
    %198 = vdwg.mxu0
    %vm199 = vcmask 9216
    %v200 = vsel %vm199, %v196, -inf
    %201 = vmax.xlane.f32.xlu0 %v200
    %v202 = vpop.xlane.xlu0 %201
    %v203 = vsub.f32 %v196, %v202
    %v204 = vmul.f32 %v203, 1.442695
    %v205 = vpow.pop %v204
    %v206 = vsel %vm199, %v205, 0.0
    %207 = vadd.xlane.f32.xlu0 %v206
    %v208 = vpop.xlane.xlu0 %207
    %v209 = vrcp.pop %v208
    %v210 = vmul.f32 %v205, %v209
    %211 = vst [vmem:[#allocation2] sm:$0x3] 0.0
    %212 = vst.msk [vmem:[#allocation2] sm:$0x3] %vm199, %v196
    %214 = vrot.lane.b32.xlu0 %v210, 2
    %v215 = vpop.permute.xlu0 %214
    %vm217 = vcmask 25616
    %218 = vst.msk [vmem:[#allocation2] sm:$0x3] %vm217, %v215
    // Predicated region
    $region26: #{tpu_custom_call.1} parent=1 // pred_check
      _
    $region27: #{tpu_custom_call.1} parent=1 // pred_check_branch
      %220 = sbr.rel (0) target = $region29
    $region28: #{tpu_custom_call.1} parent=1 // pred_region
      %s222 = ssub.s32 32, 32
      %223 = vsyncadd [#allocation3], %s222
      %s225 = sshll.u32 [#allocation2], 4
      %s226 = int_to_ptr.vmem [resolvable:$true] %s225
      %228 = dma.vmem_to_hbm [thread:$0]  %s226, 32, %s6, [#allocation3]
    $region29: #{tpu_custom_call.1} parent=1 // pred_fallthru
      _
    // Predicated region
    $region30: #{tpu_custom_call.1} parent=1 // pred_check
      _
    $region31: #{tpu_custom_call.1} parent=1 // pred_check_branch
      %230 = sbr.rel (0) target = $region33
    $region32: #{tpu_custom_call.1} parent=1 // pred_region
      %231 = dma.done [#allocation3], 32
    $region33: #{tpu_custom_call.1} parent=1 // pred_fallthru
      _
    %232 = vsyncpa [#allocation3], 1

// kernel: tpu_custom_call.1
$region0: #{tpu_custom_call.1}
  #allocation0 [shape = 'u32[]', space=smem, size = 0x4, offset = 0x4, fixed_abs, tag = 'smem constant byte address 0x4 - core index']
  #allocation1 [shape = 'u32[144,128]{1,0:T(1,128)}', space=vmem, size = 0x12000, scoped, tag = 'internal scratch']
  %s0 = inlined_call_operand.vmem [shape: bf16[2,16], index: 0, kind: input, shape index: {}]
  %s1 = inlined_call_operand.vmem [shape: bf16[2,16], index: 1, kind: input, shape index: {}]
  %s2 = inlined_call_operand.vmem [shape: bf16[32,32], index: 2, kind: input, shape index: {}]
  %s3 = inlined_call_operand.vmem [shape: f32[1,32], index: 3, kind: input, shape index: {}]
  %s4 = inlined_call_operand.vmem [shape: f32[32,2], index: 4, kind: input, shape index: {}]
  %s5 = inlined_call_operand.vmem [shape: f32[1,2], index: 5, kind: input, shape index: {}]
  %s6 = inlined_call_operand.hbm [shape: f32[2,128], index: 6, kind: output, shape index: {}]
  %s7 = sld [smem:[#allocation0]]
  $region34: #{tpu_custom_call.1} parent=0
    _
  %s9 = ssub.s32 1, %s7
  %s10 = scalar_select 0, %s9, %s7
  $region1: #{tpu_custom_call.1} parent=0
    #allocation2 [shape = 'u8[1024]{0}', space=vmem, size = 0x400, scoped, tag = 'output window, operand 0, single buffered']
    #allocation3 [shape = 's32[1]{0}', space=sflag, size = 0x4, scoped, tag = 'scoped memory for tpu_custom_call.1']
    %11 = vsyncpa [#allocation3], 0
    // Predicated region
    $region2: #{tpu_custom_call.1} parent=1 // pred_check
      _
    $region3: #{tpu_custom_call.1} parent=1 // pred_check_branch
      %13 = sbr.rel (0) target = $region5
    $region4: #{tpu_custom_call.1} parent=1 // pred_region
      _
    $region5: #{tpu_custom_call.1} parent=1 // pred_fallthru
      _
    // Predicated region
    $region6: #{tpu_custom_call.1} parent=1 // pred_check
      _
    $region7: #{tpu_custom_call.1} parent=1 // pred_check_branch
      %15 = sbr.rel (0) target = $region9
    $region8: #{tpu_custom_call.1} parent=1 // pred_region
      _
    $region9: #{tpu_custom_call.1} parent=1 // pred_fallthru
      _
    // Predicated region
    $region10: #{tpu_custom_call.1} parent=1 // pred_check
      _
    $region11: #{tpu_custom_call.1} parent=1 // pred_check_branch
      %17 = sbr.rel (0) target = $region13
    $region12: #{tpu_custom_call.1} parent=1 // pred_region
      _
    $region13: #{tpu_custom_call.1} parent=1 // pred_fallthru
      _
    // Predicated region
    $region14: #{tpu_custom_call.1} parent=1 // pred_check
      _
    $region15: #{tpu_custom_call.1} parent=1 // pred_check_branch
      %19 = sbr.rel (0) target = $region17
    $region16: #{tpu_custom_call.1} parent=1 // pred_region
      _
    $region17: #{tpu_custom_call.1} parent=1 // pred_fallthru
      _
    // Predicated region
    $region18: #{tpu_custom_call.1} parent=1 // pred_check
      _
    $region19: #{tpu_custom_call.1} parent=1 // pred_check_branch
      %21 = sbr.rel (0) target = $region21
    $region20: #{tpu_custom_call.1} parent=1 // pred_region
      _
    $region21: #{tpu_custom_call.1} parent=1 // pred_fallthru
      _
    // Predicated region
    $region22: #{tpu_custom_call.1} parent=1 // pred_check
      _
    $region23: #{tpu_custom_call.1} parent=1 // pred_check_branch
      %23 = sbr.rel (0) target = $region25
    $region24: #{tpu_custom_call.1} parent=1 // pred_region
      _
    $region25: #{tpu_custom_call.1} parent=1 // pred_fallthru
      _
    %v25 = vld [vmem:[%s0] sm:$0x1]
    %v26 = vld [vmem:[%s1] sm:$0x1]
    %v29 = vunpack.c.l.s4 1966171168
    %v30 = vunpack.c.0.s8 %v29
    %v31 = vlaneseq
    %v32 = vshrl.u32 %v31, 7
    %v33 = vsub.s32 %v30, %v32
    %v34 = vrot.slane %v26, %v33
    %v36 = vunpack.c.l.s4 1966171168
    %v37 = vunpack.c.0.s8 %v36
    %v38 = vlaneseq
    %v39 = vshrl.u32 %v38, 7
    %v40 = vsub.s32 %v37, %v39
    %v41 = vrot.slane %v34, %v40
    %42 = vrot.lane.b32.xlu0 %v41, 16
    %v43 = vpop.permute.xlu0 %42
    %vm44 = vcmask 130048
    %v47 = vsel %vm44, %v25, %v43
    %v48 = vld [vmem:[%s2] sm:$0xf]
    %v49 = vld [vmem:[%s2 + $0x4] sm:$0xf]
    %v50 = vld [vmem:[%s2 + $0x8] sm:$0xf]
    %v51 = vld [vmem:[%s2 + $0xc] sm:$0xf]
    %v52 = vld [vmem:[%s3] sm:$0x1]
    %v54 = vlaneseq
    %v55 = vshrl.u32 %v54, 7
    %v56 = vsub.s32 0, %v55
    %v57 = vrot.slane %v52, %v56
    %v63 = vunpack.c.l.b16 %v48
    %v64 = vunpack.c.l.b16 %v49
    %v65 = vunpack.c.l.b16 %v50
    %v66 = vunpack.c.l.b16 %v51
    %v67 = vpack.c.b16 %v64, %v63
    %v68 = vpack.c.b16 %v66, %v65
    %vm71 = vcmask 261120
    %v72 = vsel %vm71, %v47, 0
    %74 = vmatprep.subr.bf16.mxu0 0
    %75 = vmatpush1.bf16.msra.mxu0 %v67
    %76 = vmatprep.subr.bf16.mxu0 0
    %77 = vmatpush1.bf16.msra.mxu0 %v68
    %78 = vmatprep.subr.bf16.mxu0 0
    %79 = vmatpush1.bf16.msra.mxu0 0
    %80 = vmatprep.subr.bf16.mxu0 0
    %81 = vmatpush1.bf16.msra.mxu0 0
    %82 = vmatprep.subr.bf16.mxu0 0
    %83 = vmatpush1.bf16.msra.mxu0 0
    %84 = vmatprep.subr.bf16.mxu0 0
    %85 = vmatpush1.bf16.msra.mxu0 0
    %86 = vmatprep.subr.bf16.mxu0 0
    %87 = vmatpush1.bf16.msra.mxu0 0
    %88 = vmatprep.subr.bf16.mxu0 0
    %89 = vmatpush1.bf16.msra.mxu0 0
    %90 = vmatprep.subr.bf16.mxu0 0
    %91 = vmatpush1.bf16.msra.mxu0 0
    %92 = vmatprep.subr.bf16.mxu0 0
    %93 = vmatpush1.bf16.msra.mxu0 0
    %94 = vmatprep.subr.bf16.mxu0 0
    %95 = vmatpush1.bf16.msra.mxu0 0
    %96 = vmatprep.subr.bf16.mxu0 0
    %97 = vmatpush1.bf16.msra.mxu0 0
    %98 = vmatprep.subr.bf16.mxu0 0
    %99 = vmatpush1.bf16.msra.mxu0 0
    %100 = vmatprep.subr.bf16.mxu0 0
    %101 = vmatpush1.bf16.msra.mxu0 0
    %102 = vmatprep.subr.bf16.mxu0 0
    %103 = vmatpush1.bf16.msra.mxu0 0
    %104 = vmatprep.subr.bf16.mxu0 0
    %105 = vmatpush1.bf16.msra.mxu0 0
    %106 = vmatprep.mubr.bf16.mxu0 0
    %107 = vmatmul.mubr.bf16.gmra.mrb[0].mxu0 %v72
    %v108 = vpop.f32.mrb[0].mxu0
    %v109 = vadd.f32 %v57, %v108
    %v110 = vpop.f32.mrb[0].mxu0
    %v111 = vpop.f32.mrb[0].mxu0
    %v112 = vpop.f32.mrb[0].mxu0
    %113 = vdwg.mxu0
    %v114 = vmax.f32 %v109, 0.0
    %v115 = vld [vmem:[%s4] sm:$0xff]
    %v116 = vld [vmem:[%s4 + $0x8] sm:$0xff]
    %v117 = vld [vmem:[%s4 + $0x10] sm:$0xff]
    %v118 = vld [vmem:[%s4 + $0x18] sm:$0xff]
    %v119 = vld [vmem:[%s5] sm:$0x1]
    %v121 = vlaneseq
    %v122 = vshrl.u32 %v121, 7
    %v123 = vsub.s32 0, %v122
    %v124 = vrot.slane %v119, %v123
    %v127 = vsel %vm71, %v114, 0
    %129 = vmatprep.subr.mxu0 0.0
    %130 = vmatpush1.msra.mxu0 %v115
    %131 = vmatprep.subr.mxu0 0.0
    %132 = vmatpush1.msra.mxu0 %v116
    %133 = vmatprep.subr.mxu0 0.0
    %134 = vmatpush1.msra.mxu0 %v117
    %135 = vmatprep.subr.mxu0 0.0
    %136 = vmatpush1.msra.mxu0 %v118
    %137 = vmatprep.subr.mxu0 0.0
    %138 = vmatpush1.msra.mxu0 0.0
    %139 = vmatprep.subr.mxu0 0.0
    %140 = vmatpush1.msra.mxu0 0.0
    %141 = vmatprep.subr.mxu0 0.0
    %142 = vmatpush1.msra.mxu0 0.0
    %143 = vmatprep.subr.mxu0 0.0
    %144 = vmatpush1.msra.mxu0 0.0
    %145 = vmatprep.subr.mxu0 0.0
    %146 = vmatpush1.msra.mxu0 0.0
    %147 = vmatprep.subr.mxu0 0.0
    %148 = vmatpush1.msra.mxu0 0.0
    %149 = vmatprep.subr.mxu0 0.0
    %150 = vmatpush1.msra.mxu0 0.0
    %151 = vmatprep.subr.mxu0 0.0
    %152 = vmatpush1.msra.mxu0 0.0
    %153 = vmatprep.subr.mxu0 0.0
    %154 = vmatpush1.msra.mxu0 0.0
    %155 = vmatprep.subr.mxu0 0.0
    %156 = vmatpush1.msra.mxu0 0.0
    %157 = vmatprep.subr.mxu0 0.0
    %158 = vmatpush1.msra.mxu0 0.0
    %159 = vmatprep.subr.mxu0 0.0
    %160 = vmatpush1.msra.mxu0 0.0
    %161 = vmatprep.subr.mxu0 0.0
    %162 = vmatpush1.msra.mxu0 0.0
    %163 = vmatprep.subr.mxu0 0.0
    %164 = vmatpush1.msra.mxu0 0.0
    %165 = vmatprep.subr.mxu0 0.0
    %166 = vmatpush1.msra.mxu0 0.0
    %167 = vmatprep.subr.mxu0 0.0
    %168 = vmatpush1.msra.mxu0 0.0
    %169 = vmatprep.subr.mxu0 0.0
    %170 = vmatpush1.msra.mxu0 0.0
    %171 = vmatprep.subr.mxu0 0.0
    %172 = vmatpush1.msra.mxu0 0.0
    %173 = vmatprep.subr.mxu0 0.0
    %174 = vmatpush1.msra.mxu0 0.0
    %175 = vmatprep.subr.mxu0 0.0
    %176 = vmatpush1.msra.mxu0 0.0
    %177 = vmatprep.subr.mxu0 0.0
    %178 = vmatpush1.msra.mxu0 0.0
    %179 = vmatprep.subr.mxu0 0.0
    %180 = vmatpush1.msra.mxu0 0.0
    %181 = vmatprep.subr.mxu0 0.0
    %182 = vmatpush1.msra.mxu0 0.0
    %183 = vmatprep.subr.mxu0 0.0
    %184 = vmatpush1.msra.mxu0 0.0
    %185 = vmatprep.subr.mxu0 0.0
    %186 = vmatpush1.msra.mxu0 0.0
    %187 = vmatprep.subr.mxu0 0.0
    %188 = vmatpush1.msra.mxu0 0.0
    %189 = vmatprep.subr.mxu0 0.0
    %190 = vmatpush1.msra.mxu0 0.0
    %191 = vmatprep.subr.mxu0 0.0
    %192 = vmatpush1.msra.mxu0 0.0
    %193 = vmatprep.mubr.f32.mxu0 0.0
    %194 = vmatmul.mubr.f32.gmra.mrb[0].mxu0 %v127
    %v195 = vpop.f32.mrb[0].mxu0
    %v196 = vadd.f32 %v124, %v195
    %v197 = vpop.f32.mrb[0].mxu0
    %198 = vdwg.mxu0
    %vm199 = vcmask 9216
    %v200 = vsel %vm199, %v196, -inf
    %201 = vmax.xlane.f32.xlu0 %v200
    %v202 = vpop.xlane.xlu0 %201
    %v203 = vsub.f32 %v196, %v202
    %v204 = vmul.f32 %v203, 1.442695
    %v205 = vpow.pop %v204
    %v206 = vsel %vm199, %v205, 0.0
    %207 = vadd.xlane.f32.xlu0 %v206
    %v208 = vpop.xlane.xlu0 %207
    %v209 = vrcp.pop %v208
    %v210 = vmul.f32 %v205, %v209
    %211 = vst [vmem:[#allocation2] sm:$0x3] 0.0
    %212 = vst.msk [vmem:[#allocation2] sm:$0x3] %vm199, %v196
    %214 = vrot.lane.b32.xlu0 %v210, 2
    %v215 = vpop.permute.xlu0 %214
    %vm217 = vcmask 25616
    %218 = vst.msk [vmem:[#allocation2] sm:$0x3] %vm217, %v215
    // Predicated region
    $region26: #{tpu_custom_call.1} parent=1 // pred_check
      _
    $region27: #{tpu_custom_call.1} parent=1 // pred_check_branch
      %220 = sbr.rel (0) target = $region29
    $region28: #{tpu_custom_call.1} parent=1 // pred_region
      %s222 = ssub.s32 32, 32
      %223 = vsyncadd [#allocation3], %s222
      %s225 = sshll.u32 [#allocation2], 4
      %s226 = int_to_ptr.vmem [resolvable:$true] %s225
      %228 = dma.vmem_to_hbm [thread:$0]  %s226, 32, %s6, [#allocation3]
    $region29: #{tpu_custom_call.1} parent=1 // pred_fallthru
      _
    // Predicated region
    $region30: #{tpu_custom_call.1} parent=1 // pred_check
      _
    $region31: #{tpu_custom_call.1} parent=1 // pred_check_branch
      %230 = sbr.rel (0) target = $region33
    $region32: #{tpu_custom_call.1} parent=1 // pred_region
      %231 = dma.done [#allocation3], 32
    $region33: #{tpu_custom_call.1} parent=1 // pred_fallthru
      _
    %232 = vsyncpa [#allocation3], 1

</llo_original>
